<compile_context>
chip_gen: v7x
topology: tpu7x:2x2x1
jax: 0.10.0
libtpu: 0.0.40
codegen_flags: <defaults>
</compile_context>

<pallas_src>
import jax
import jax.numpy as jnp
from jax.experimental import pallas as pl
from jax.experimental.pallas import tpu as pltpu


def _round_up(x: int, m: int) -> int:
    return (x + m - 1) // m * m


def _vmem_block_bytes(shape, dtype) -> int:
    """VMEM footprint of one block, honoring (sublane, 128-lane) tiling."""
    itemsize = jnp.dtype(dtype).itemsize
    sublane = 8 * max(1, 4 // itemsize)        # 8 for f32, 16 for bf16, 32 for i8
    dims = list(shape)
    dims[-1] = _round_up(dims[-1], 128)
    if len(dims) >= 2:
        dims[-2] = _round_up(dims[-2], sublane)
    n = 1
    for d in dims:
        n *= int(d)
    return n * itemsize


def _vmem_capacity_bytes() -> int:
    try:
        cap = getattr(pltpu.get_tpu_info(), "vmem_capacity_bytes", None)
        if cap:
            return int(cap)
    except Exception:
        pass
    return 64 << 20            # conservative fallback (v7x per-core size)


def _make_gcn_kernel(use_bias: bool, aggregate_first: bool, mxu_dtype):
    """Build the kernel body for one (Bt, Npad, *) x (TDout) slab."""

    def _compute(text_ref, adj_ref, w_ref, bias_ref, out_ref):
        bt, n, din = text_ref.shape
        dout = w_ref.shape[-1]

        adj = adj_ref[...]                                        # (Bt, N, N)

        # denom = rowsum(adj) + 1, accumulated in f32 (XLU slot, overlaps MXU).
        denom = jnp.sum(adj, axis=2, keepdims=True, dtype=jnp.float32) + 1.0
        inv = pl.reciprocal(denom, approx=False)                  # exact

        text_v = text_ref[...]
        w = w_ref[...]
        if mxu_dtype is not None:
            # bf16 x bf16 -> f32 MXU fast path for bf16 inputs.
            adj = adj.astype(mxu_dtype)
            text_v = text_v.astype(mxu_dtype)
            w = w.astype(mxu_dtype)

        if aggregate_first:
            # (adj @ text) @ W  -- fewer FLOPs when Dout > Din.
            agg_t = jnp.einsum("bij,bjd->bid", adj, text_v,
                               preferred_element_type=jnp.float32)  # (Bt,N,Din)
            if mxu_dtype is not None:
                agg_t = agg_t.astype(mxu_dtype)
            out = jnp.dot(agg_t.reshape(bt * n, din), w,
                          preferred_element_type=jnp.float32).reshape(bt, n, dout)
        else:
            # adj @ (text @ W): flatten batch into M to fill the MXU.
            hidden = jnp.dot(text_v.reshape(bt * n, din), w,
                             preferred_element_type=jnp.float32).reshape(bt, n, dout)
            if mxu_dtype is not None:
                hidden = hidden.astype(mxu_dtype)
            out = jnp.einsum("bij,bjd->bid", adj, hidden,
                             preferred_element_type=jnp.float32)    # (Bt,N,Dout)

        out = out * inv                                             # (Bt,N,1) bcast
        if use_bias:
            out = out + bias_ref[...].astype(jnp.float32)           # (1,TDout) bcast
        out_ref[...] = out.astype(out_ref.dtype)

    if use_bias:
        def kernel(text_ref, adj_ref, w_ref, bias_ref, out_ref):
            _compute(text_ref, adj_ref, w_ref, bias_ref, out_ref)
    else:
        def kernel(text_ref, adj_ref, w_ref, out_ref):
            _compute(text_ref, adj_ref, w_ref, None, out_ref)
    return kernel


def graph_convolution(text, adj, weight, bias=None):
    """text: (B, N, Din), adj: (B, N, N), weight: (Din, Dout), bias: (Dout,) or None."""
    B, N, Din = text.shape
    Din_w, Dout = weight.shape
    assert Din == Din_w, "weight shape mismatch"
    assert adj.shape == (B, N, N), "adj shape mismatch"

    use_bias = bias is not None

    # Padding: features to 128 lanes.  For non-tiny N, pad all N axes to 128 so
    # adj is lane-dense (unmasked loads, full MXU K passes); tiny N keeps the
    # 8-sublane granule to avoid inflating adj HBM traffic.
    Npad = _round_up(N, 128) if N >= 64 else _round_up(N, 8)
    Dinp = _round_up(Din, 128)
    Doutp = _round_up(Dout, 128)

    aggregate_first = Doutp > Dinp          # (adj @ text) @ W when it saves FLOPs

    cap = _vmem_capacity_bytes()
    budget = min(48 << 20, int(cap * 0.70))  # ~48 MiB on 128 MiB chips, ~45 on v7x

    def step_bytes(bt, tdout):
        t = _vmem_block_bytes((bt, Npad, Dinp), text.dtype)
        a = _vmem_block_bytes((bt, Npad, Npad), adj.dtype)
        o = _vmem_block_bytes((bt, Npad, tdout), jnp.float32)
        w = _vmem_block_bytes((Dinp, tdout), weight.dtype)
        bb = _vmem_block_bytes((1, tdout), jnp.float32) if use_bias else 0
        # in-kernel f32 temporaries (intermediate + result before store)
        tmp = bt * Npad * (Dinp + tdout) * 4
        # every BlockSpec operand is double-buffered, incl. constant-index
        # weight / bias blocks.
        return 2 * (t + a + o + w + bb) + tmp

    def fit_bt(tdout):
        bt = max(1, min(B, int(pl.cdiv(1024, Npad))))   # ~1024 MXU rows / step
        while bt > 1 and step_bytes(bt, tdout) > budget:
            bt -= 1
        return bt

    TDout = Doutp
    Bt = fit_bt(TDout)

    # Second "parallel" grid axis over Dout tiles (aggregate-second path only,
    # so the projection is not recomputed): used when the batch grid would be
    # a single step (nothing for v7x's second TensorCore or the DMA pipeline)
    # or when even Bt=1 blows the budget.
    if (not aggregate_first) and Doutp >= 256:
        if Bt >= B or step_bytes(Bt, TDout) > budget:
            cands = [d for d in range(128, Doutp, 128) if Doutp % d == 0]
            if cands:
                TDout = max(cands)
                Bt = fit_bt(TDout)
    # TODO(synk): for very large N (the (Npad, Npad) adj slab alone over budget
    # even at Bt=1), add an adj-column (K) reduction grid axis marked
    # "arbitrary" with an f32 accumulator and pl.when init/finalize instead of
    # cranking vmem_limit_bytes.

    Bpad = _round_up(B, Bt)

    # Zero padding is semantics-preserving: padded adj rows/cols contribute 0
    # to both the aggregation and the row-sum (denom >= 1, no divide-by-zero),
    # padded weight/bias columns are 0, padded rows/batches are sliced off.
    text_p = jnp.pad(text, ((0, Bpad - B), (0, Npad - N), (0, Dinp - Din)))
    adj_p = jnp.pad(adj, ((0, Bpad - B), (0, Npad - N), (0, Npad - N)))
    weight_p = jnp.pad(weight, ((0, Dinp - Din), (0, Doutp - Dout)))

    # bf16 inputs -> bf16 MXU operands (f32 accumulation); f32 stays exact f32.
    mxu_dtype = jnp.bfloat16 if text.dtype == jnp.bfloat16 else None

    in_specs = [
        pl.BlockSpec((Bt, Npad, Dinp), lambda b, j: (b, 0, 0)),
        pl.BlockSpec((Bt, Npad, Npad), lambda b, j: (b, 0, 0)),
        # TODO(synk): pipeline_mode=pl.Buffered(1) on the constant-index weight
        # / bias blocks would free one buffer of VMEM; kept at the default
        # double-buffering for lowering robustness and accounted for in
        # step_bytes instead.
        pl.BlockSpec((Dinp, TDout), lambda b, j: (0, j)),
    ]
    args = [text_p, adj_p, weight_p]
    if use_bias:
        bias_p = jnp.pad(bias, (0, Doutp - Dout)).reshape(1, Doutp)
        in_specs.append(pl.BlockSpec((1, TDout), lambda b, j: (0, j)))
        args.append(bias_p)

    est = step_bytes(Bt, TDout)
    # Generation-aware limit: generous, but always leaves headroom for the
    # compiler's internal scratch (caps at ~56 MiB on v7x's 64 MiB VMEM).
    vmem_limit = int(min(cap - (8 << 20),
                         max(budget + (16 << 20), est + (8 << 20))))

    agg_feat = Din if aggregate_first else Dout
    flops = 2 * B * N * Din * Dout + 2 * B * N * N * agg_feat
    bytes_accessed = (text.size * jnp.dtype(text.dtype).itemsize
                      + adj.size * jnp.dtype(adj.dtype).itemsize
                      + weight.size * jnp.dtype(weight.dtype).itemsize
                      + B * N * Dout * 4
                      + (Dout * 4 if use_bias else 0))

    out_padded = pl.pallas_call(
        _make_gcn_kernel(use_bias, aggregate_first, mxu_dtype),
        out_shape=jax.ShapeDtypeStruct((Bpad, Npad, Doutp), jnp.float32),
        grid_spec=pltpu.PrefetchScalarGridSpec(
            num_scalar_prefetch=0,
            grid=(Bpad // Bt, Doutp // TDout),
            in_specs=in_specs,
            out_specs=pl.BlockSpec((Bt, Npad, TDout), lambda b, j: (b, 0, j)),
        ),
        compiler_params=pltpu.CompilerParams(
            dimension_semantics=("parallel", "parallel"),
            vmem_limit_bytes=vmem_limit,
        ),
        cost_estimate=pl.CostEstimate(
            flops=int(flops), transcendentals=0,
            bytes_accessed=int(bytes_accessed)),
    )(*args)

    return out_padded[:B, :N, :Dout]


def _reference(text, adj, weight, bias):
    hidden = jnp.matmul(text.astype(jnp.float32), weight)
    denom = jnp.sum(adj, axis=2, keepdims=True) + 1.0
    out = jnp.matmul(adj, hidden) / denom
    return out if bias is None else out + bias


if __name__ == "__main__":
    key = jax.random.PRNGKey(0)

    # Case 1: small shapes consistent with the module: batch=2, seq(N)=8,
    # in_features=32, out_features=16 (bias and no-bias).
    B, N, Din, Dout = 2, 8, 32, 16
    k1, k2, k3, k4 = jax.random.split(key, 4)
    text = jax.random.normal(k1, (B, N, Din), dtype=jnp.float32)
    adj = jax.random.uniform(k2, (B, N, N), dtype=jnp.float32)     # non-negative adjacency
    weight = jax.random.normal(k3, (Din, Dout), dtype=jnp.float32) * 0.1
    bias = jax.random.normal(k4, (Dout,), dtype=jnp.float32) * 0.1

    out = jax.block_until_ready(graph_convolution(text, adj, weight, bias))
    out_nb = jax.block_until_ready(graph_convolution(text, adj, weight, None))
    assert out.shape == (B, N, Dout)
    assert out_nb.shape == (B, N, Dout)
    assert jnp.allclose(out, _reference(text, adj, weight, bias),
                        atol=1e-5, rtol=1e-5), "mismatch (case 1, bias)"
    assert jnp.allclose(out_nb, _reference(text, adj, weight, None),
                        atol=1e-5, rtol=1e-5), "mismatch (case 1, no bias)"

    # Case 2: exercises the Dout-tiling (second grid axis) path.
    B2, N2, Din2, Dout2 = 2, 16, 256, 256
    k1, k2, k3, k4 = jax.random.split(jax.random.PRNGKey(1), 4)
    text2 = jax.random.normal(k1, (B2, N2, Din2), dtype=jnp.float32)
    adj2 = jax.random.uniform(k2, (B2, N2, N2), dtype=jnp.float32)
    weight2 = jax.random.normal(k3, (Din2, Dout2), dtype=jnp.float32) * 0.05
    bias2 = jax.random.normal(k4, (Dout2,), dtype=jnp.float32) * 0.1
    out2 = jax.block_until_ready(graph_convolution(text2, adj2, weight2, bias2))
    assert jnp.allclose(out2, _reference(text2, adj2, weight2, bias2),
                        atol=1e-4, rtol=1e-4), "mismatch (case 2)"

    # Case 3: exercises the aggregate-first ((adj@text)@W) path (Dout > Din).
    B3, N3, Din3, Dout3 = 2, 8, 128, 256
    k1, k2, k3, k4 = jax.random.split(jax.random.PRNGKey(2), 4)
    text3 = jax.random.normal(k1, (B3, N3, Din3), dtype=jnp.float32)
    adj3 = jax.random.uniform(k2, (B3, N3, N3), dtype=jnp.float32)
    weight3 = jax.random.normal(k3, (Din3, Dout3), dtype=jnp.float32) * 0.05
    bias3 = jax.random.normal(k4, (Dout3,), dtype=jnp.float32) * 0.1
    out3 = jax.block_until_ready(graph_convolution(text3, adj3, weight3, bias3))
    assert jnp.allclose(out3, _reference(text3, adj3, weight3, bias3),
                        atol=1e-4, rtol=1e-4), "mismatch (case 3)"

    print("KERNEL_OK")
</pallas_src>

<mosaic_0001>
module attributes {stable_mosaic.version = 11 : i64} {
  func.func @kernel(%arg0: i32, %arg1: i32, %arg2: memref<2x8x128xf32, #tpu.memory_space<vmem>>, %arg3: memref<2x8x8xf32, #tpu.memory_space<vmem>>, %arg4: memref<128x128xf32, #tpu.memory_space<vmem>>, %arg5: memref<1x128xf32, #tpu.memory_space<vmem>>, %arg6: memref<2x8x128xf32, #tpu.memory_space<vmem>>) attributes {dimension_semantics = [#tpu.dimension_semantics<parallel>, #tpu.dimension_semantics<parallel>], iteration_bounds = array<i64: 1, 1>, scalar_prefetch = 0 : i64, scratch_operands = 0 : i64, tpu.core_type = #tpu.core_type<tc>, window_params = [{transform_indices = @transform_0, window_bounds = array<i64: 2, 8, 128>}, {transform_indices = @transform_1, window_bounds = array<i64: 2, 8, 8>}, {transform_indices = @transform_2, window_bounds = array<i64: 128, 128>}, {transform_indices = @transform_3, window_bounds = array<i64: 1, 128>}, {transform_indices = @transform_4, window_bounds = array<i64: 2, 8, 128>}]} {
    %c0 = arith.constant 0 : index
    %c0_0 = arith.constant 0 : index
    %c0_1 = arith.constant 0 : index
    %0 = vector.load %arg3[%c0, %c0_0, %c0_1] : memref<2x8x8xf32, #tpu.memory_space<vmem>>, vector<2x8x8xf32>
    %cst = arith.constant dense<0.000000e+00> : vector<2x8xf32>
    %1 = vector.multi_reduction <add>, %0, %cst [2] : vector<2x8x8xf32> to vector<2x8xf32>
    %2 = vector.shape_cast %1 : vector<2x8xf32> to vector<2x8x1xf32>
    %cst_2 = arith.constant 1.000000e+00 : f32
    %3 = vector.broadcast %cst_2 : f32 to vector<2x8x1xf32>
    %4 = arith.addf %2, %3 : vector<2x8x1xf32>
    %5 = tpu.reciprocal %4 : vector<2x8x1xf32> -> vector<2x8x1xf32>
    %c0_3 = arith.constant 0 : index
    %c0_4 = arith.constant 0 : index
    %c0_5 = arith.constant 0 : index
    %6 = vector.load %arg2[%c0_3, %c0_4, %c0_5] : memref<2x8x128xf32, #tpu.memory_space<vmem>>, vector<2x8x128xf32>
    %c0_6 = arith.constant 0 : index
    %c0_7 = arith.constant 0 : index
    %7 = vector.load %arg4[%c0_6, %c0_7] : memref<128x128xf32, #tpu.memory_space<vmem>>, vector<128x128xf32>
    %8 = vector.shape_cast %6 : vector<2x8x128xf32> to vector<16x128xf32>
    %cst_8 = arith.constant dense<0.000000e+00> : vector<16x128xf32>
    %9 = tpu.matmul %8, %7, %cst_8 {dimension_numbers = #tpu.dot_dimension_numbers<[1], [0], [0], [1], [0, 0, 1, 1], [], []>} : vector<16x128xf32>, vector<128x128xf32>, vector<16x128xf32> -> vector<16x128xf32>
    %10 = vector.shape_cast %9 : vector<16x128xf32> to vector<2x8x128xf32>
    "tpu.trace_start"() <{level = 10 : i32, message = "bij,bjd->bid"}> : () -> ()
    %cst_9 = arith.constant dense<0.000000e+00> : vector<2x8x128xf32>
    %11 = tpu.matmul %0, %10, %cst_9 {dimension_numbers = #tpu.dot_dimension_numbers<[2], [1], [1], [2], [0, 0, 0, 1, 1, 2], [0], [0]>} : vector<2x8x8xf32>, vector<2x8x128xf32>, vector<2x8x128xf32> -> vector<2x8x128xf32>
    "tpu.trace_stop"() : () -> ()
    %12 = vector.broadcast %5 : vector<2x8x1xf32> to vector<2x8x128xf32>
    %13 = arith.mulf %11, %12 : vector<2x8x128xf32>
    %c0_10 = arith.constant 0 : index
    %c0_11 = arith.constant 0 : index
    %14 = vector.load %arg5[%c0_10, %c0_11] : memref<1x128xf32, #tpu.memory_space<vmem>>, vector<1x128xf32>
    %15 = vector.shape_cast %14 : vector<1x128xf32> to vector<1x1x128xf32>
    %16 = vector.broadcast %15 : vector<1x1x128xf32> to vector<2x8x128xf32>
    %17 = arith.addf %13, %16 : vector<2x8x128xf32>
    %c0_12 = arith.constant 0 : index
    %c0_13 = arith.constant 0 : index
    %c0_14 = arith.constant 0 : index
    %18 = vector.load %arg6[%c0_12, %c0_13, %c0_14] : memref<2x8x128xf32, #tpu.memory_space<vmem>>, vector<2x8x128xf32>
    tpu.vector_store %arg6[%c0_12, %c0_13, %c0_14], %17 {strides = array<i32>} : memref<2x8x128xf32, #tpu.memory_space<vmem>>, vector<2x8x128xf32>,
    return
  }
  func.func @transform_0(%arg0: i32, %arg1: i32) -> (i32, i32, i32) {
    %c0_i32 = arith.constant 0 : i32
    %c0_i32_0 = arith.constant 0 : i32
    %c0_i32_1 = arith.constant 0 : i32
    return %arg0, %c0_i32, %c0_i32_0 : i32, i32, i32
  }
  func.func @transform_1(%arg0: i32, %arg1: i32) -> (i32, i32, i32) {
    %c0_i32 = arith.constant 0 : i32
    %c0_i32_0 = arith.constant 0 : i32
    %c0_i32_1 = arith.constant 0 : i32
    return %arg0, %c0_i32, %c0_i32_0 : i32, i32, i32
  }
  func.func @transform_2(%arg0: i32, %arg1: i32) -> (i32, i32) {
    %c0_i32 = arith.constant 0 : i32
    %c0_i32_0 = arith.constant 0 : i32
    return %c0_i32, %arg1 : i32, i32
  }
  func.func @transform_3(%arg0: i32, %arg1: i32) -> (i32, i32) {
    %c0_i32 = arith.constant 0 : i32
    %c0_i32_0 = arith.constant 0 : i32
    return %c0_i32, %arg1 : i32, i32
  }
  func.func @transform_4(%arg0: i32, %arg1: i32) -> (i32, i32, i32) {
    %c0_i32 = arith.constant 0 : i32
    %c0_i32_0 = arith.constant 0 : i32
    return %arg0, %c0_i32, %arg1 : i32, i32, i32
  }
}

</mosaic_0001>

<llo_original>
// kernel: tpu_custom_call.1
$region0: #{tpu_custom_call.1}
  #allocation0 [shape = 'u32[]', space=smem, size = 0x4, offset = 0x4, fixed_abs, tag = 'smem constant byte address 0x4 - core index']
  #allocation1 [shape = 'u32[144,128]{1,0:T(1,128)}', space=vmem, size = 0x12000, scoped, tag = 'internal scratch']
  %s0 = inlined_call_operand.hbm [shape: f32[2,8,128], index: 0, kind: input, shape index: {}]
  %s1 = inlined_call_operand.hbm [shape: f32[2,8,8], index: 1, kind: input, shape index: {}]
  %s2 = inlined_call_operand.hbm [shape: f32[128,128], index: 2, kind: input, shape index: {}]
  %s3 = inlined_call_operand.vmem [shape: f32[1,128], index: 3, kind: input, shape index: {}]
  %s4 = inlined_call_operand.hbm [shape: f32[2,8,128], index: 4, kind: output, shape index: {}]
  %s5 = sld [smem:[#allocation0]]
  $region38: #{tpu_custom_call.1} parent=0
    _
  %s7 = ssub.s32 1, %s5
  %s8 = scalar_select 0, %s7, %s5
  $region1: #{tpu_custom_call.1} parent=0
    #allocation2 [shape = 'u8[8192]{0}', space=vmem, size = 0x2000, scoped, tag = 'input window, operand 0, single buffered']
    #allocation3 [shape = 's32[1]{0}', space=sflag, size = 0x4, scoped, tag = 'scoped memory for tpu_custom_call.1']
    #allocation4 [shape = 's32[1]{0}', space=sflag, size = 0x4, scoped, tag = 'scoped memory for tpu_custom_call.1']
    #allocation5 [shape = 'u8[8192]{0}', space=vmem, size = 0x2000, scoped, tag = 'input window, operand 1, single buffered']
    #allocation6 [shape = 's32[1]{0}', space=sflag, size = 0x4, scoped, tag = 'scoped memory for tpu_custom_call.1']
    #allocation7 [shape = 'u8[65536]{0}', space=vmem, size = 0x10000, scoped, tag = 'input window, operand 2, single buffered']
    #allocation8 [shape = 'u8[8192]{0}', space=vmem, size = 0x2000, scoped, tag = 'output window, operand 0, single buffered']
    %9 = vsyncpa [#allocation3], 0
    %10 = vsyncpa [#allocation6], 0
    %11 = vsyncpa [#allocation4], 0
    // Predicated region
    $region2: #{tpu_custom_call.1} parent=1 // pred_check
      _
    $region3: #{tpu_custom_call.1} parent=1 // pred_check_branch
      %13 = sbr.rel (0) target = $region5
    $region4: #{tpu_custom_call.1} parent=1 // pred_region
      %s15 = ssub.s32 256, 256
      %16 = vsyncadd [#allocation3], %s15
      %s17 = sshll.u32 [#allocation2], 4
      %s18 = int_to_ptr.vmem [resolvable:$true] %s17
      %23 = dma.hbm_to_vmem [thread:$0]  %s0, 256, %s18, [#allocation3], 128, 128, 8
    $region5: #{tpu_custom_call.1} parent=1 // pred_fallthru
      _
    // Predicated region
    $region6: #{tpu_custom_call.1} parent=1 // pred_check
      _
    $region7: #{tpu_custom_call.1} parent=1 // pred_check_branch
      %25 = sbr.rel (0) target = $region9
    $region8: #{tpu_custom_call.1} parent=1 // pred_region
      %s27 = ssub.s32 256, 256
      %28 = vsyncadd [#allocation6], %s27
      %s29 = sshll.u32 [#allocation5], 4
      %s30 = int_to_ptr.vmem [resolvable:$true] %s29
      %35 = dma.hbm_to_vmem [thread:$0]  %s1, 256, %s30, [#allocation6], 128, 128, 8
    $region9: #{tpu_custom_call.1} parent=1 // pred_fallthru
      _
    // Predicated region
    $region10: #{tpu_custom_call.1} parent=1 // pred_check
      _
    $region11: #{tpu_custom_call.1} parent=1 // pred_check_branch
      %37 = sbr.rel (0) target = $region13
    $region12: #{tpu_custom_call.1} parent=1 // pred_region
      %s39 = ssub.s32 2048, 2048
      %40 = vsyncadd [#allocation6], %s39
      %s41 = sshll.u32 [#allocation7], 4
      %s42 = int_to_ptr.vmem [resolvable:$true] %s41
      %47 = dma.hbm_to_vmem [thread:$0]  %s2, 2048, %s42, [#allocation6], 128, 128, 8
    $region13: #{tpu_custom_call.1} parent=1 // pred_fallthru
      _
    // Predicated region
    $region14: #{tpu_custom_call.1} parent=1 // pred_check
      _
    $region15: #{tpu_custom_call.1} parent=1 // pred_check_branch
      %49 = sbr.rel (0) target = $region17
    $region16: #{tpu_custom_call.1} parent=1 // pred_region
      _
    $region17: #{tpu_custom_call.1} parent=1 // pred_fallthru
      _
    // Predicated region
    $region18: #{tpu_custom_call.1} parent=1 // pred_check
      _
    $region19: #{tpu_custom_call.1} parent=1 // pred_check_branch
      %51 = sbr.rel (0) target = $region21
    $region20: #{tpu_custom_call.1} parent=1 // pred_region
      %52 = dma.done [#allocation3], 256
    $region21: #{tpu_custom_call.1} parent=1 // pred_fallthru
      _
    // Predicated region
    $region22: #{tpu_custom_call.1} parent=1 // pred_check
      _
    $region23: #{tpu_custom_call.1} parent=1 // pred_check_branch
      %54 = sbr.rel (0) target = $region25
    $region24: #{tpu_custom_call.1} parent=1 // pred_region
      %55 = dma.done [#allocation6], 256
    $region25: #{tpu_custom_call.1} parent=1 // pred_fallthru
      _
    // Predicated region
    $region26: #{tpu_custom_call.1} parent=1 // pred_check
      _
    $region27: #{tpu_custom_call.1} parent=1 // pred_check_branch
      %57 = sbr.rel (0) target = $region29
    $region28: #{tpu_custom_call.1} parent=1 // pred_region
      %58 = dma.done [#allocation6], 2048
    $region29: #{tpu_custom_call.1} parent=1 // pred_fallthru
      _
    %v59 = vld [vmem:[#allocation5] sm:$0xff]
    %v60 = vld [vmem:[#allocation5 + $0x8] sm:$0xff]
    %vm61 = vcmask 64512
    %v62 = vsel %vm61, %v59, 0.0
    %63 = vadd.xlane.f32.xlu0 %v62
    %v64 = vpop.xlane.xlu0 %63
    %v65 = vsel %vm61, %v60, 0.0
    %66 = vadd.xlane.f32.xlu0 %v65
    %v67 = vpop.xlane.xlu0 %66
    %v68 = vadd.f32 %v64, 1.0
    %v69 = vadd.f32 %v67, 1.0
    %v70 = vrcp.pop %v68
    %v71 = vrcp.pop %v69
    %v72 = vld [vmem:[#allocation2] sm:$0xff]
    %v73 = vld [vmem:[#allocation2 + $0x8] sm:$0xff]
    %v74 = vld [vmem:[#allocation7] sm:$0xff]
    %v75 = vld [vmem:[#allocation7 + $0x8] sm:$0xff]
    %v76 = vld [vmem:[#allocation7 + $0x10] sm:$0xff]
    %v77 = vld [vmem:[#allocation7 + $0x18] sm:$0xff]
    %v78 = vld [vmem:[#allocation7 + $0x20] sm:$0xff]
    %v79 = vld [vmem:[#allocation7 + $0x28] sm:$0xff]
    %v80 = vld [vmem:[#allocation7 + $0x30] sm:$0xff]
    %v81 = vld [vmem:[#allocation7 + $0x38] sm:$0xff]
    %v82 = vld [vmem:[#allocation7 + $0x40] sm:$0xff]
    %v83 = vld [vmem:[#allocation7 + $0x48] sm:$0xff]
    %v84 = vld [vmem:[#allocation7 + $0x50] sm:$0xff]
    %v85 = vld [vmem:[#allocation7 + $0x58] sm:$0xff]
    %v86 = vld [vmem:[#allocation7 + $0x60] sm:$0xff]
    %v87 = vld [vmem:[#allocation7 + $0x68] sm:$0xff]
    %v88 = vld [vmem:[#allocation7 + $0x70] sm:$0xff]
    %v89 = vld [vmem:[#allocation7 + $0x78] sm:$0xff]
    %90 = vmatprep.subr.mxu0 0.0
    %91 = vmatpush1.msra.mxu0 %v74
    %92 = vmatprep.subr.mxu0 0.0
    %93 = vmatpush1.msra.mxu0 %v75
    %94 = vmatprep.subr.mxu0 0.0
    %95 = vmatpush1.msra.mxu0 %v76
    %96 = vmatprep.subr.mxu0 0.0
    %97 = vmatpush1.msra.mxu0 %v77
    %98 = vmatprep.subr.mxu0 0.0
    %99 = vmatpush1.msra.mxu0 %v78
    %100 = vmatprep.subr.mxu0 0.0
    %101 = vmatpush1.msra.mxu0 %v79
    %102 = vmatprep.subr.mxu0 0.0
    %103 = vmatpush1.msra.mxu0 %v80
    %104 = vmatprep.subr.mxu0 0.0
    %105 = vmatpush1.msra.mxu0 %v81
    %106 = vmatprep.subr.mxu0 0.0
    %107 = vmatpush1.msra.mxu0 %v82
    %108 = vmatprep.subr.mxu0 0.0
    %109 = vmatpush1.msra.mxu0 %v83
    %110 = vmatprep.subr.mxu0 0.0
    %111 = vmatpush1.msra.mxu0 %v84
    %112 = vmatprep.subr.mxu0 0.0
    %113 = vmatpush1.msra.mxu0 %v85
    %114 = vmatprep.subr.mxu0 0.0
    %115 = vmatpush1.msra.mxu0 %v86
    %116 = vmatprep.subr.mxu0 0.0
    %117 = vmatpush1.msra.mxu0 %v87
    %118 = vmatprep.subr.mxu0 0.0
    %119 = vmatpush1.msra.mxu0 %v88
    %120 = vmatprep.subr.mxu0 0.0
    %121 = vmatpush1.msra.mxu0 %v89
    %122 = vmatprep.subr.mxu0 0.0
    %123 = vmatpush1.msra.mxu0 0.0
    %124 = vmatprep.subr.mxu0 0.0
    %125 = vmatpush1.msra.mxu0 0.0
    %126 = vmatprep.subr.mxu0 0.0
    %127 = vmatpush1.msra.mxu0 0.0
    %128 = vmatprep.subr.mxu0 0.0
    %129 = vmatpush1.msra.mxu0 0.0
    %130 = vmatprep.subr.mxu0 0.0
    %131 = vmatpush1.msra.mxu0 0.0
    %132 = vmatprep.subr.mxu0 0.0
    %133 = vmatpush1.msra.mxu0 0.0
    %134 = vmatprep.subr.mxu0 0.0
    %135 = vmatpush1.msra.mxu0 0.0
    %136 = vmatprep.subr.mxu0 0.0
    %137 = vmatpush1.msra.mxu0 0.0
    %138 = vmatprep.subr.mxu0 0.0
    %139 = vmatpush1.msra.mxu0 0.0
    %140 = vmatprep.subr.mxu0 0.0
    %141 = vmatpush1.msra.mxu0 0.0
    %142 = vmatprep.subr.mxu0 0.0
    %143 = vmatpush1.msra.mxu0 0.0
    %144 = vmatprep.subr.mxu0 0.0
    %145 = vmatpush1.msra.mxu0 0.0
    %146 = vmatprep.subr.mxu0 0.0
    %147 = vmatpush1.msra.mxu0 0.0
    %148 = vmatprep.subr.mxu0 0.0
    %149 = vmatpush1.msra.mxu0 0.0
    %150 = vmatprep.subr.mxu0 0.0
    %151 = vmatpush1.msra.mxu0 0.0
    %152 = vmatprep.subr.mxu0 0.0
    %153 = vmatpush1.msra.mxu0 0.0
    %154 = vmatprep.mubr.f32.mxu0 0.0
    %155 = vmatmul.mubr.f32.gmra.mrb[0].mxu0 %v72
    %v156 = vpop.f32.mrb[0].mxu0
    %v157 = vadd.f32 0.0, %v156
    %v158 = vpop.f32.mrb[0].mxu0
    %159 = vmatprep.mubr.f32.mxu0 0.0
    %160 = vmatmul.mubr.f32.gmra.mrb[0].mxu0 %v73
    %v161 = vpop.f32.mrb[0].mxu0
    %v162 = vadd.f32 0.0, %v161
    %v163 = vpop.f32.mrb[0].mxu0
    %164 = vdwg.mxu0
    %v166 = vsel %vm61, %v59, 0
    %168 = vmatprep.subr.mxu0 0.0
    %169 = vmatpush1.msra.mxu0 %v157
    %170 = vmatprep.subr.mxu0 0.0
    %171 = vmatpush1.msra.mxu0 0.0
    %172 = vmatprep.subr.mxu0 0.0
    %173 = vmatpush1.msra.mxu0 0.0
    %174 = vmatprep.subr.mxu0 0.0
    %175 = vmatpush1.msra.mxu0 0.0
    %176 = vmatprep.subr.mxu0 0.0
    %177 = vmatpush1.msra.mxu0 0.0
    %178 = vmatprep.subr.mxu0 0.0
    %179 = vmatpush1.msra.mxu0 0.0
    %180 = vmatprep.subr.mxu0 0.0
    %181 = vmatpush1.msra.mxu0 0.0
    %182 = vmatprep.subr.mxu0 0.0
    %183 = vmatpush1.msra.mxu0 0.0
    %184 = vmatprep.subr.mxu0 0.0
    %185 = vmatpush1.msra.mxu0 0.0
    %186 = vmatprep.subr.mxu0 0.0
    %187 = vmatpush1.msra.mxu0 0.0
    %188 = vmatprep.subr.mxu0 0.0
    %189 = vmatpush1.msra.mxu0 0.0
    %190 = vmatprep.subr.mxu0 0.0
    %191 = vmatpush1.msra.mxu0 0.0
    %192 = vmatprep.subr.mxu0 0.0
    %193 = vmatpush1.msra.mxu0 0.0
    %194 = vmatprep.subr.mxu0 0.0
    %195 = vmatpush1.msra.mxu0 0.0
    %196 = vmatprep.subr.mxu0 0.0
    %197 = vmatpush1.msra.mxu0 0.0
    %198 = vmatprep.subr.mxu0 0.0
    %199 = vmatpush1.msra.mxu0 0.0
    %200 = vmatprep.subr.mxu0 0.0
    %201 = vmatpush1.msra.mxu0 0.0
    %202 = vmatprep.subr.mxu0 0.0
    %203 = vmatpush1.msra.mxu0 0.0
    %204 = vmatprep.subr.mxu0 0.0
    %205 = vmatpush1.msra.mxu0 0.0
    %206 = vmatprep.subr.mxu0 0.0
    %207 = vmatpush1.msra.mxu0 0.0
    %208 = vmatprep.subr.mxu0 0.0
    %209 = vmatpush1.msra.mxu0 0.0
    %210 = vmatprep.subr.mxu0 0.0
    %211 = vmatpush1.msra.mxu0 0.0
    %212 = vmatprep.subr.mxu0 0.0
    %213 = vmatpush1.msra.mxu0 0.0
    %214 = vmatprep.subr.mxu0 0.0
    %215 = vmatpush1.msra.mxu0 0.0
    %216 = vmatprep.subr.mxu0 0.0
    %217 = vmatpush1.msra.mxu0 0.0
    %218 = vmatprep.subr.mxu0 0.0
    %219 = vmatpush1.msra.mxu0 0.0
    %220 = vmatprep.subr.mxu0 0.0
    %221 = vmatpush1.msra.mxu0 0.0
    %222 = vmatprep.subr.mxu0 0.0
    %223 = vmatpush1.msra.mxu0 0.0
    %224 = vmatprep.subr.mxu0 0.0
    %225 = vmatpush1.msra.mxu0 0.0
    %226 = vmatprep.subr.mxu0 0.0
    %227 = vmatpush1.msra.mxu0 0.0
    %228 = vmatprep.subr.mxu0 0.0
    %229 = vmatpush1.msra.mxu0 0.0
    %230 = vmatprep.subr.mxu0 0.0
    %231 = vmatpush1.msra.mxu0 0.0
    %232 = vmatprep.mubr.f32.mxu0 0.0
    %233 = vmatmul.mubr.f32.gmra.mrb[0].mxu0 %v166
    %v234 = vpop.f32.mrb[0].mxu0
    %v235 = vadd.f32 0.0, %v234
    %v236 = vpop.f32.mrb[0].mxu0
    %237 = vdwg.mxu0
    %v239 = vsel %vm61, %v60, 0
    %241 = vmatprep.subr.mxu0 0.0
    %242 = vmatpush1.msra.mxu0 %v162
    %243 = vmatprep.subr.mxu0 0.0
    %244 = vmatpush1.msra.mxu0 0.0
    %245 = vmatprep.subr.mxu0 0.0
    %246 = vmatpush1.msra.mxu0 0.0
    %247 = vmatprep.subr.mxu0 0.0
    %248 = vmatpush1.msra.mxu0 0.0
    %249 = vmatprep.subr.mxu0 0.0
    %250 = vmatpush1.msra.mxu0 0.0
    %251 = vmatprep.subr.mxu0 0.0
    %252 = vmatpush1.msra.mxu0 0.0
    %253 = vmatprep.subr.mxu0 0.0
    %254 = vmatpush1.msra.mxu0 0.0
    %255 = vmatprep.subr.mxu0 0.0
    %256 = vmatpush1.msra.mxu0 0.0
    %257 = vmatprep.subr.mxu0 0.0
    %258 = vmatpush1.msra.mxu0 0.0
    %259 = vmatprep.subr.mxu0 0.0
    %260 = vmatpush1.msra.mxu0 0.0
    %261 = vmatprep.subr.mxu0 0.0
    %262 = vmatpush1.msra.mxu0 0.0
    %263 = vmatprep.subr.mxu0 0.0
    %264 = vmatpush1.msra.mxu0 0.0
    %265 = vmatprep.subr.mxu0 0.0
    %266 = vmatpush1.msra.mxu0 0.0
    %267 = vmatprep.subr.mxu0 0.0
    %268 = vmatpush1.msra.mxu0 0.0
    %269 = vmatprep.subr.mxu0 0.0
    %270 = vmatpush1.msra.mxu0 0.0
    %271 = vmatprep.subr.mxu0 0.0
    %272 = vmatpush1.msra.mxu0 0.0
    %273 = vmatprep.subr.mxu0 0.0
    %274 = vmatpush1.msra.mxu0 0.0
    %275 = vmatprep.subr.mxu0 0.0
    %276 = vmatpush1.msra.mxu0 0.0
    %277 = vmatprep.subr.mxu0 0.0
    %278 = vmatpush1.msra.mxu0 0.0
    %279 = vmatprep.subr.mxu0 0.0
    %280 = vmatpush1.msra.mxu0 0.0
    %281 = vmatprep.subr.mxu0 0.0
    %282 = vmatpush1.msra.mxu0 0.0
    %283 = vmatprep.subr.mxu0 0.0
    %284 = vmatpush1.msra.mxu0 0.0
    %285 = vmatprep.subr.mxu0 0.0
    %286 = vmatpush1.msra.mxu0 0.0
    %287 = vmatprep.subr.mxu0 0.0
    %288 = vmatpush1.msra.mxu0 0.0
    %289 = vmatprep.subr.mxu0 0.0
    %290 = vmatpush1.msra.mxu0 0.0
    %291 = vmatprep.subr.mxu0 0.0
    %292 = vmatpush1.msra.mxu0 0.0
    %293 = vmatprep.subr.mxu0 0.0
    %294 = vmatpush1.msra.mxu0 0.0
    %295 = vmatprep.subr.mxu0 0.0
    %296 = vmatpush1.msra.mxu0 0.0
    %297 = vmatprep.subr.mxu0 0.0
    %298 = vmatpush1.msra.mxu0 0.0
    %299 = vmatprep.subr.mxu0 0.0
    %300 = vmatpush1.msra.mxu0 0.0
    %301 = vmatprep.subr.mxu0 0.0
    %302 = vmatpush1.msra.mxu0 0.0
    %303 = vmatprep.subr.mxu0 0.0
    %304 = vmatpush1.msra.mxu0 0.0
    %305 = vmatprep.mubr.f32.mxu0 0.0
    %306 = vmatmul.mubr.f32.gmra.mrb[0].mxu0 %v239
    %v307 = vpop.f32.mrb[0].mxu0
    %v308 = vadd.f32 0.0, %v307
    %v309 = vpop.f32.mrb[0].mxu0
    %310 = vdwg.mxu0
    %v311 = vmul.f32 %v235, %v70
    %v312 = vmul.f32 %v308, %v71
    %v313 = vld [vmem:[%s3] sm:$0x1]
    %v315 = vlaneseq
    %v316 = vshrl.u32 %v315, 7
    %v317 = vsub.s32 0, %v316
    %v318 = vrot.slane %v313, %v317
    %v320 = vadd.f32 %v311, %v318
    %v321 = vadd.f32 %v312, %v318
    %322 = vst [vmem:[#allocation8] sm:$0xff] %v320
    %323 = vst [vmem:[#allocation8 + $0x8] sm:$0xff] %v321
    // Predicated region
    $region30: #{tpu_custom_call.1} parent=1 // pred_check
      _
    $region31: #{tpu_custom_call.1} parent=1 // pred_check_branch
      %325 = sbr.rel (0) target = $region33
    $region32: #{tpu_custom_call.1} parent=1 // pred_region
      %s327 = ssub.s32 256, 256
      %328 = vsyncadd [#allocation4], %s327
      %s329 = sshll.u32 [#allocation8], 4
      %s330 = int_to_ptr.vmem [resolvable:$true] %s329
      %335 = dma.vmem_to_hbm [thread:$0]  %s330, 256, %s4, [#allocation4], 128, 128, 8
    $region33: #{tpu_custom_call.1} parent=1 // pred_fallthru
      _
    // Predicated region
    $region34: #{tpu_custom_call.1} parent=1 // pred_check
      _
    $region35: #{tpu_custom_call.1} parent=1 // pred_check_branch
      %337 = sbr.rel (0) target = $region37
    $region36: #{tpu_custom_call.1} parent=1 // pred_region
      %338 = dma.done [#allocation4], 256
    $region37: #{tpu_custom_call.1} parent=1 // pred_fallthru
      _
    %339 = vsyncpa [#allocation3], 1
    %340 = vsyncpa [#allocation6], 1
    %341 = vsyncpa [#allocation4], 1

</llo_original>
